<compile_context>
chip_gen: v7x
topology: tpu7x:2x2x1
jax: 0.10.0
libtpu: 0.0.40
codegen_flags: <defaults>
</compile_context>

<pallas_src>
import functools
import math

import jax
import jax.numpy as jnp
from jax import lax
from jax.experimental import pallas as pl
from jax.experimental.pallas import tpu as pltpu


def _cdiv(a, b):
    return -(-a // b)


def _round_up(n, m):
    return (n + m - 1) // m * m


def _vmem_limit_bytes():
    """~Half of physical VMEM: 64 MiB on v5e/v6e (128 MiB), 32 MiB on v7x (64 MiB)."""
    try:
        cap = int(pltpu.get_tpu_info().vmem_capacity_bytes)
    except Exception:
        cap = 64 * 1024 * 1024          # conservative: assume v7x-sized VMEM
    return int(min(cap // 2, 64 * 1024 * 1024))


_VMEM_LIMIT_BYTES = _vmem_limit_bytes()


# ---------------------------------------------------------------------------
# Kernels
# ---------------------------------------------------------------------------

def _linear_single_k_kernel(x_ref, w_ref, b_ref, o_ref):
    # x_ref: (TB, D) VMEM   w_ref: (1, D) f32 VMEM   b_ref: (1,) f32 SMEM
    # o_ref: (TB, 1) VMEM
    prod = x_ref[...].astype(jnp.float32) * w_ref[...]
    row = jnp.sum(prod, axis=-1, keepdims=True)              # XLU row reduce
    o_ref[...] = (row + b_ref[0]).astype(o_ref.dtype)


def _linear_multi_k_kernel(x_ref, w_ref, b_ref, o_ref, acc_ref, *,
                           d_total, tk, mask_tail):
    # x_ref: (TB, TK) VMEM   w_ref: (1, TK) f32 VMEM   b_ref: (1,) f32 SMEM
    # o_ref: (TB, 1) VMEM    acc_ref: (TB, 1) f32 VMEM scratch
    k = pl.program_id(1)

    @pl.when(k == 0)
    def _():
        acc_ref[...] = jnp.zeros_like(acc_ref)

    prod = x_ref[...].astype(jnp.float32) * w_ref[...]
    if mask_tail:
        # Ragged K tail: columns beyond D hold unspecified data (possibly
        # NaN/Inf) that must not reach the reduction.  The mask is all-true on
        # every step except the last one.
        col = lax.broadcasted_iota(jnp.int32, prod.shape, 1)
        prod = jnp.where(col < (d_total - k * tk), prod, 0.0)
    acc_ref[...] += jnp.sum(prod, axis=-1, keepdims=True)    # XLU row reduce

    @pl.when(k == pl.num_programs(1) - 1)
    def _():
        o_ref[...] = (acc_ref[...] + b_ref[0]).astype(o_ref.dtype)


# ---------------------------------------------------------------------------
# Wrapper
# ---------------------------------------------------------------------------

@functools.partial(jax.jit, static_argnames=("tb_max", "tk_max"))
def linear_model_forward(x, weight, bias, *, tb_max=512, tk_max=2048):
    """x: (B, *features). weight: (1, D) PyTorch-style. bias: (1,)."""
    B = x.shape[0]
    x2d = x.reshape(B, -1)                          # torch .view(B, -1)
    D = x2d.shape[1]

    w = weight.reshape(1, D).astype(jnp.float32)    # keep weight f32 (PyTorch)
    b = bias.reshape(1).astype(jnp.float32)         # SMEM scalar

    itemsize = jnp.dtype(x2d.dtype).itemsize
    # Sublane packing minimum: 8 rows for 32-bit, 16 for bf16, 32 for int8/fp8.
    sub = max(8, 8 * (4 // max(1, itemsize)))

    # ---- K (reduction) tiling: grow TK first, keep it lane-wide -------------
    tk_cap = max(128, (tk_max // 128) * 128)
    if D <= tk_cap:
        TK, n_k = D, 1                              # single K tile == full D
    else:
        TK = tk_cap                                 # multiple of 128
        n_k = _cdiv(D, TK)

    # ---- batch tiling: >=2 tiles when possible (v7x: shard across 2 TCs) ----
    if B < 2 * sub:
        TB, n_b = B, 1                              # single tile == full batch
    else:
        TB = min(_round_up(tb_max, sub), _round_up(_cdiv(B, 2), sub))
        n_b = _cdiv(B, TB)

    # x and the output batch dim stay UNPADDED; only the tiny weight is padded
    # (so its blocks are always in-bounds) and the tiny output is allocated at
    # n_b * TB rows and sliced back to B.
    D_pad = n_k * TK
    if D_pad != D:
        w = jnp.pad(w, ((0, 0), (0, D_pad - D)))
    B_out = n_b * TB

    cost = pl.CostEstimate(
        flops=2 * B * D,
        transcendentals=0,
        bytes_accessed=itemsize * B * D + 4 * D + itemsize * B,
    )

    if n_k == 1:
        # Fast path: no accumulator, no pl.when, 1-D grid over batch tiles.
        out = pl.pallas_call(
            _linear_single_k_kernel,
            out_shape=jax.ShapeDtypeStruct((B_out, 1), x2d.dtype),
            grid_spec=pltpu.PrefetchScalarGridSpec(
                num_scalar_prefetch=0,
                grid=(n_b,),
                in_specs=[
                    pl.BlockSpec((TB, D), lambda i: (i, 0)),             # x tile
                    pl.BlockSpec((1, D), lambda i: (0, 0)),              # weight
                    pl.BlockSpec(memory_space=pltpu.MemorySpace.SMEM),   # bias
                ],
                out_specs=pl.BlockSpec((TB, 1), lambda i: (i, 0)),
            ),
            compiler_params=pltpu.CompilerParams(
                dimension_semantics=("parallel",),
                vmem_limit_bytes=_VMEM_LIMIT_BYTES,
            ),
            cost_estimate=cost,
        )(x2d, w, b)
    else:
        kernel = functools.partial(
            _linear_multi_k_kernel, d_total=D, tk=TK, mask_tail=(D % TK != 0))
        out = pl.pallas_call(
            kernel,
            out_shape=jax.ShapeDtypeStruct((B_out, 1), x2d.dtype),
            grid_spec=pltpu.PrefetchScalarGridSpec(
                num_scalar_prefetch=0,
                grid=(n_b, n_k),                    # reduction (K) axis last
                in_specs=[
                    pl.BlockSpec((TB, TK), lambda i, k: (i, k)),         # x tile
                    pl.BlockSpec((1, TK), lambda i, k: (0, k)),          # weight
                    pl.BlockSpec(memory_space=pltpu.MemorySpace.SMEM),   # bias
                ],
                out_specs=pl.BlockSpec((TB, 1), lambda i, k: (i, 0)),
                scratch_shapes=[pltpu.VMEM((TB, 1), jnp.float32)],
            ),
            compiler_params=pltpu.CompilerParams(
                dimension_semantics=("parallel", "arbitrary"),
                vmem_limit_bytes=_VMEM_LIMIT_BYTES,
            ),
            cost_estimate=cost,
        )(x2d, w, b)

    return out[:B]


if __name__ == "__main__":
    key = jax.random.PRNGKey(0)
    kx, kw, kb, kx2 = jax.random.split(key, 4)

    # Small shapes consistent with the module: batch=16, features (4, 72)
    # flattened to input_dim = 288.
    B, C, F = 16, 4, 72
    D = C * F
    x = jax.random.normal(kx, (B, C, F), dtype=jnp.float32)

    # Deterministic PyTorch-style init: uniform(-1/sqrt(D), 1/sqrt(D)).
    bound = 1.0 / math.sqrt(D)
    weight = jax.random.uniform(kw, (1, D), minval=-bound, maxval=bound,
                                dtype=jnp.float32)
    bias = jax.random.uniform(kb, (1,), minval=-bound, maxval=bound,
                              dtype=jnp.float32)

    ref = x.reshape(B, -1) @ weight.T + bias

    # Default tiling: single-K-tile fast path, 2 batch tiles (megacore-friendly).
    out = jax.block_until_ready(linear_model_forward(x, weight, bias))
    assert out.shape == (B, 1)
    assert jnp.allclose(out, ref, atol=1e-5, rtol=1e-5)

    # Small K tiles: exercises the accumulator + ragged K-tail mask path
    # (D=288 over TK=128 tiles -> last tile only 32 columns wide).
    out_tiled = jax.block_until_ready(
        linear_model_forward(x, weight, bias, tb_max=512, tk_max=128))
    assert jnp.allclose(out_tiled, ref, atol=1e-5, rtol=1e-5)

    # Ragged batch tail (B=19 over TB=16 tiles): unpadded x, sliced output.
    B2 = 19
    x2 = jax.random.normal(kx2, (B2, C, F), dtype=jnp.float32)
    ref2 = x2.reshape(B2, -1) @ weight.T + bias
    out_ragged = jax.block_until_ready(
        linear_model_forward(x2, weight, bias, tb_max=512, tk_max=128))
    assert out_ragged.shape == (B2, 1)
    assert jnp.allclose(out_ragged, ref2, atol=1e-5, rtol=1e-5)

    print("KERNEL_OK")
</pallas_src>

<mosaic_0001>
module attributes {stable_mosaic.version = 11 : i64} {
  func.func @_linear_single_k_kernel(%arg0: i32, %arg1: memref<8x288xf32, #tpu.memory_space<vmem>>, %arg2: memref<1x288xf32, #tpu.memory_space<vmem>>, %arg3: memref<1xf32, #tpu.memory_space<smem>>, %arg4: memref<8x1xf32, #tpu.memory_space<vmem>>) attributes {dimension_semantics = [#tpu.dimension_semantics<parallel>], iteration_bounds = array<i64: 2>, scalar_prefetch = 0 : i64, scratch_operands = 0 : i64, tpu.core_type = #tpu.core_type<tc>, window_params = [{transform_indices = @transform_0, window_bounds = array<i64: 8, 288>}, {pipeline_mode = #tpu.pipeline_mode<synchronous>, transform_indices = @transform_1, window_bounds = array<i64: 1, 288>}, {transform_indices = @transform_2, window_bounds = array<i64: 1>}, {transform_indices = @transform_3, window_bounds = array<i64: 8, 1>}]} {
    %c0 = arith.constant 0 : index
    %c0_0 = arith.constant 0 : index
    %0 = vector.load %arg1[%c0, %c0_0] : memref<8x288xf32, #tpu.memory_space<vmem>>, vector<8x288xf32>
    %c0_1 = arith.constant 0 : index
    %c0_2 = arith.constant 0 : index
    %1 = vector.load %arg2[%c0_1, %c0_2] : memref<1x288xf32, #tpu.memory_space<vmem>>, vector<1x288xf32>
    %2 = vector.broadcast %1 : vector<1x288xf32> to vector<8x288xf32>
    %3 = arith.mulf %0, %2 : vector<8x288xf32>
    %cst = arith.constant dense<0.000000e+00> : vector<8xf32>
    %4 = vector.multi_reduction <add>, %3, %cst [1] : vector<8x288xf32> to vector<8xf32>
    %5 = vector.shape_cast %4 : vector<8xf32> to vector<8x1xf32>
    %c0_3 = arith.constant 0 : index
    %6 = memref.load %arg3[%c0_3] : memref<1xf32, #tpu.memory_space<smem>>
    %7 = vector.broadcast %6 : f32 to vector<8x1xf32>
    %8 = arith.addf %5, %7 : vector<8x1xf32>
    %c0_4 = arith.constant 0 : index
    %c0_5 = arith.constant 0 : index
    %9 = vector.load %arg4[%c0_4, %c0_5] : memref<8x1xf32, #tpu.memory_space<vmem>>, vector<8x1xf32>
    tpu.vector_store %arg4[%c0_4, %c0_5], %8 {strides = array<i32>} : memref<8x1xf32, #tpu.memory_space<vmem>>, vector<8x1xf32>,
    return
  }
  func.func @transform_0(%arg0: i32) -> (i32, i32) {
    %c0_i32 = arith.constant 0 : i32
    %c0_i32_0 = arith.constant 0 : i32
    return %arg0, %c0_i32 : i32, i32
  }
  func.func @transform_1(%arg0: i32) -> (i32, i32) {
    %c0_i32 = arith.constant 0 : i32
    %c0_i32_0 = arith.constant 0 : i32
    %c0_i32_1 = arith.constant 0 : i32
    return %c0_i32, %c0_i32_0 : i32, i32
  }
  func.func @transform_2(%arg0: i32) -> i32 {
    %c0_i32 = arith.constant 0 : i32
    %c0_i32_0 = arith.constant 0 : i32
    return %c0_i32 : i32
  }
  func.func @transform_3(%arg0: i32) -> (i32, i32) {
    %c0_i32 = arith.constant 0 : i32
    %c0_i32_0 = arith.constant 0 : i32
    return %arg0, %c0_i32 : i32, i32
  }
}

</mosaic_0001>

<llo_original>
// kernel: linear_model_forward.1
$region0: #{linear_model_forward.1}
  #allocation0 [shape = 'u32[]', space=smem, size = 0x4, offset = 0x4, fixed_abs, tag = 'smem constant byte address 0x4 - core index']
  #allocation1 [shape = 'u32[144,128]{1,0:T(1,128)}', space=vmem, size = 0x12000, scoped, tag = 'internal scratch']
  #allocation2 [shape = 'f32[1]{0:T(128)S(6)}', space=smem, size = 0x200, scoped, tag = 'scoped memory for linear_model_forward.1']
  %s0 = inlined_call_operand.vmem [shape: f32[16,288], index: 0, kind: input, shape index: {}]
  %s1 = inlined_call_operand.vmem [shape: f32[1,288], index: 1, kind: input, shape index: {}]
  %s2 = inlined_call_operand.<no memory space> [shape: f32[1], index: 2, kind: input, shape index: {}]
  %s3 = inlined_call_operand.vmem [shape: f32[16,1], index: 3, kind: output, shape index: {}]
  %s4 = sld [smem:[#allocation0]]
  $region45: #{linear_model_forward.1} parent=0
    _
  %s6 = ssub.s32 1, %s4
  %s7 = scalar_select 0, %s6, %s4
  %8 = sst [smem:[#allocation2]] %s2
  loop: start=0, step=1, limit=4
  $region2: #{linear_model_forward.1} parent=0 // loop_pre_header
    _
  $region3: #{linear_model_forward.1} parent=0 // loop_header
    %s10 = sphi 0, %s14
    %p11 = scmp.ge.s32.totalorder %s10, 4
    %s20 = sphi 0, %s22
    %s23 = sphi 0, %s20
    %s24 = sphi 0, %s23
    %s40 = sphi 0, %s24
    %s44 = sphi 0, %s44
    %s46 = sphi 0, %s44
    %s47 = sphi 0, %s46
    %s61 = sphi 0, %s47
    %s65 = sphi 0, %s65
    %s67 = sphi 0, %s65
    %s68 = sphi 0, %s67
    %s82 = sphi 0, %s68
    %s88 = sphi 0, %s90
    %s91 = sphi 0, %s88
    %s92 = sphi 0, %s91
    %s108 = sphi 0, %s92
  $region4: #{linear_model_forward.1} parent=0 // loop_header_branch
    %13 = sbr.rel (%p11) target = $region8
  $region5: #{linear_model_forward.1} parent=0 // loop_body
    %s15 = ssub.s32 %s10, 1
    %s16 = ssub.s32 %s10, 2
    %s17 = sadd.s32 %s10, 1
    %s18 = ssub.s32 %s10, %s17
    %p19 = scmp.eq.s32.totalorder %s18, 0
    %s21 = sadd.s32 %s20, 1
    %s22 = scalar_select %p19, %s20, %s21
    %p25 = pneg %p19
    %p26 = scmp.eq.s32.totalorder %s10, 1
    %p27 = por %p25, %p26
    %p28 = scmp.ne.s32.totalorder %s20, %s23
    %p29 = scmp.eq.s32.totalorder %s10, 0
    %p30 = por %p28, %p29
    %p31 = scmp.ne.s32.totalorder %s20, %s23
    %p32 = scmp.eq.s32.totalorder %s15, 1
    %p33 = por %p31, %p32
    %p34 = scmp.ne.s32.totalorder %s23, %s24
    %p35 = scmp.eq.s32.totalorder %s15, 0
    %p36 = por %p34, %p35
    %p37 = scmp.ne.s32.totalorder %s23, %s24
    %p38 = scmp.eq.s32.totalorder %s16, 1
    %p39 = por %p37, %p38
    %p41 = scmp.ne.s32.totalorder %s24, %s40
    %p42 = scmp.eq.s32.totalorder %s16, 0
    %p43 = por %p41, %p42
    %s45 = sadd.s32 %s44, 1
    %p48 = scmp.eq.s32.totalorder %s10, 1
    %p49 = scmp.ne.s32.totalorder %s44, %s46
    %p50 = scmp.eq.s32.totalorder %s10, 0
    %p51 = por %p49, %p50
    %p52 = scmp.ne.s32.totalorder %s44, %s46
    %p53 = scmp.eq.s32.totalorder %s15, 1
    %p54 = por %p52, %p53
    %p55 = scmp.ne.s32.totalorder %s46, %s47
    %p56 = scmp.eq.s32.totalorder %s15, 0
    %p57 = por %p55, %p56
    %p58 = scmp.ne.s32.totalorder %s46, %s47
    %p59 = scmp.eq.s32.totalorder %s16, 1
    %p60 = por %p58, %p59
    %p62 = scmp.ne.s32.totalorder %s47, %s61
    %p63 = scmp.eq.s32.totalorder %s16, 0
    %p64 = por %p62, %p63
    %s66 = sadd.s32 %s65, 1
    %p69 = scmp.eq.s32.totalorder %s10, 1
    %p70 = scmp.ne.s32.totalorder %s65, %s67
    %p71 = scmp.eq.s32.totalorder %s10, 0
    %p72 = por %p70, %p71
    %p73 = scmp.ne.s32.totalorder %s65, %s67
    %p74 = scmp.eq.s32.totalorder %s15, 1
    %p75 = por %p73, %p74
    %p76 = scmp.ne.s32.totalorder %s67, %s68
    %p77 = scmp.eq.s32.totalorder %s15, 0
    %p78 = por %p76, %p77
    %p79 = scmp.ne.s32.totalorder %s67, %s68
    %p80 = scmp.eq.s32.totalorder %s16, 1
    %p81 = por %p79, %p80
    %p83 = scmp.ne.s32.totalorder %s68, %s82
    %p84 = scmp.eq.s32.totalorder %s16, 0
    %p85 = por %p83, %p84
    %s86 = ssub.s32 %s10, %s17
    %p87 = scmp.eq.s32.totalorder %s86, 0
    %s89 = sadd.s32 %s88, 1
    %s90 = scalar_select %p87, %s88, %s89
    %p93 = pneg %p87
    %p94 = scmp.eq.s32.totalorder %s10, 1
    %p95 = por %p93, %p94
    %p96 = scmp.ne.s32.totalorder %s88, %s91
    %p97 = scmp.eq.s32.totalorder %s10, 0
    %p98 = por %p96, %p97
    %p99 = scmp.ne.s32.totalorder %s88, %s91
    %p100 = scmp.eq.s32.totalorder %s15, 1
    %p101 = por %p99, %p100
    %p102 = scmp.ne.s32.totalorder %s91, %s92
    %p103 = scmp.eq.s32.totalorder %s15, 0
    %p104 = por %p102, %p103
    %p105 = scmp.ne.s32.totalorder %s91, %s92
    %p106 = scmp.eq.s32.totalorder %s16, 1
    %p107 = por %p105, %p106
    %p109 = scmp.ne.s32.totalorder %s92, %s108
    %p110 = scmp.eq.s32.totalorder %s16, 0
    %p111 = por %p109, %p110
    %p112 = scmp.le.s32.totalorder 1, %s10
    %p113 = scmp.lt.s32.totalorder %s10, 3
    %p114 = pnand %p112, %p113
    %p115 = pneg %p114
    // Predicated region
    $region9: #{linear_model_forward.1} parent=5 // pred_check
      _
    $region10: #{linear_model_forward.1} parent=5 // pred_check_branch
      %117 = sbr.rel (%p114) target = $region12
    $region11: #{linear_model_forward.1} parent=5 // pred_region
      %s118 = ssub.s32 %s10, 1
      // Predicated region
      $region13: #{linear_model_forward.1} parent=11 // pred_check
        %p119 = pneg %p57
      $region14: #{linear_model_forward.1} parent=11 // pred_check_branch
        %121 = sbr.rel (%p119) target = $region16
      $region15: #{linear_model_forward.1} parent=11 // pred_region
        _
      $region16: #{linear_model_forward.1} parent=11 // pred_fallthru
        _
      // Predicated region
      $region17: #{linear_model_forward.1} parent=11 // pred_check
        %p122 = pneg %p78
      $region18: #{linear_model_forward.1} parent=11 // pred_check_branch
        %124 = sbr.rel (%p122) target = $region20
      $region19: #{linear_model_forward.1} parent=11 // pred_region
        _
      $region20: #{linear_model_forward.1} parent=11 // pred_fallthru
        _
    $region12: #{linear_model_forward.1} parent=5 // pred_fallthru
      _
    %p125 = scmp.lt.s32.totalorder %s10, 2
    // Predicated region
    $region21: #{linear_model_forward.1} parent=5 // pred_check
      %p126 = pneg %p125
    $region22: #{linear_model_forward.1} parent=5 // pred_check_branch
      %128 = sbr.rel (%p126) target = $region24
    $region23: #{linear_model_forward.1} parent=5 // pred_region
      // Predicated region
      $region25: #{linear_model_forward.1} parent=23 // pred_check
        %p129 = pneg %p30
      $region26: #{linear_model_forward.1} parent=23 // pred_check_branch
        %131 = sbr.rel (%p129) target = $region28
      $region27: #{linear_model_forward.1} parent=23 // pred_region
        %p132 = scmp.lt.s32.totalorder %s10, 1
        %s133 = scalar_select %p132, %s10, 1
        %s134 = smul.addr %s133, 3
        %s135 = smul.addr %s134, 8
        %s136 = scalar_lea.vmem %s0, %s135
      $region28: #{linear_model_forward.1} parent=23 // pred_fallthru
        _
    $region24: #{linear_model_forward.1} parent=5 // pred_fallthru
      _
    %p137 = scmp.le.s32.totalorder 1, %s10
    %p138 = scmp.lt.s32.totalorder %s10, 3
    %p139 = pnand %p137, %p138
    %p140 = pneg %p139
    // Predicated region
    $region29: #{linear_model_forward.1} parent=5 // pred_check
      _
    $region30: #{linear_model_forward.1} parent=5 // pred_check_branch
      %142 = sbr.rel (%p139) target = $region32
    $region31: #{linear_model_forward.1} parent=5 // pred_region
      %s143 = ssub.s32 %s10, 1
      %p144 = scmp.lt.s32.totalorder %s15, 1
      %s145 = scalar_select %p144, %s15, 1
      %s146 = smul.addr %s145, 3
      %s147 = smul.addr %s146, 8
      %s148 = scalar_lea.vmem %s0, %s147
      %p149 = pneg %p36
      %p150 = pneg %p33
      %p151 = pneg %p57
      %p152 = pneg %p54
      %p153 = pneg %p78
      %p154 = pneg %p75
      %p155 = pneg %p104
      %p156 = pneg %p101
      %p157 = scmp.lt.s32.totalorder %s15, 1
      %s158 = scalar_select %p157, %s15, 1
      %s159 = smul.addr %s158, 8
      %s160 = scalar_lea.vmem %s3, %s159
      %p161 = scmp.lt.s32.totalorder %s15, 1
      %s162 = scalar_select %p161, %s15, 1
      %s163 = smul.addr %s162, 3
      %s164 = smul.addr %s163, 8
      %s165 = scalar_lea.vmem %s0, %s164
      %p166 = scmp.lt.s32.totalorder %s15, 1
      %s167 = scalar_select %p166, %s15, 1
      %s168 = smul.addr %s167, 8
      %s169 = scalar_lea.vmem %s3, %s168
      %v170 = vld [vmem:[%s165] sm:$0xff]
      %v171 = vld [vmem:[%s165 + $0x8] sm:$0xff]
      %v172 = vld [vmem:[%s165 + $0x10] sm:$0xff]
      %v173 = vld [vmem:[%s1] sm:$0x7]
      %v175 = vlaneseq
      %v176 = vshrl.u32 %v175, 7
      %v177 = vsub.s32 0, %v176
      %v178 = vrot.slane %v173, %v177
      %v179 = vlaneseq
      %v180 = vshrl.u32 %v179, 7
      %v181 = vsub.s32 1, %v180
      %v182 = vrot.slane %v173, %v181
      %v183 = vlaneseq
      %v184 = vshrl.u32 %v183, 7
      %v185 = vsub.s32 2, %v184
      %v186 = vrot.slane %v173, %v185
      %v190 = vmul.f32 %v170, %v178
      %v191 = vmul.f32 %v171, %v182
      %v192 = vmul.f32 %v172, %v186
      %v193 = vadd.f32 %v190, %v191
      %vm194 = vcmask 261120
      %v195 = vsel %vm194, %v192, 0.0
      %v196 = vadd.f32 %v193, %v195
      %197 = vadd.xlane.f32.xlu0 %v196
      %v198 = vpop.xlane.xlu0 %197
      %s199 = sld [smem:[#allocation2]]
      %v200 = vstv %s199
      %v201 = vadd.f32 %v198, %v200
      %vm202 = vcmask 7168
      %203 = vst.msk [vmem:[%s169] sm:$0xff] %vm202, %v201
      %p204 = scmp.lt.s32.totalorder %s15, 1
      %s205 = scalar_select %p204, %s15, 1
      %s206 = smul.addr %s205, 8
      %s207 = scalar_lea.vmem %s3, %s206
      // Predicated region
      $region33: #{linear_model_forward.1} parent=31 // pred_check
        %p208 = pneg %p101
      $region34: #{linear_model_forward.1} parent=31 // pred_check_branch
        %210 = sbr.rel (%p208) target = $region36
      $region35: #{linear_model_forward.1} parent=31 // pred_region
        _
      $region36: #{linear_model_forward.1} parent=31 // pred_fallthru
        _
    $region32: #{linear_model_forward.1} parent=5 // pred_fallthru
      _
    %p211 = scmp.le.s32.totalorder 2, %s10
    // Predicated region
    $region37: #{linear_model_forward.1} parent=5 // pred_check
      %p212 = pneg %p211
    $region38: #{linear_model_forward.1} parent=5 // pred_check_branch
      %214 = sbr.rel (%p212) target = $region40
    $region39: #{linear_model_forward.1} parent=5 // pred_region
      %s215 = ssub.s32 %s10, 2
      // Predicated region
      $region41: #{linear_model_forward.1} parent=39 // pred_check
        %p216 = pneg %p107
      $region42: #{linear_model_forward.1} parent=39 // pred_check_branch
        %218 = sbr.rel (%p216) target = $region44
      $region43: #{linear_model_forward.1} parent=39 // pred_region
        %p219 = scmp.lt.s32.totalorder %s16, 1
        %s220 = scalar_select %p219, %s16, 1
        %s221 = smul.addr %s220, 8
        %s222 = scalar_lea.vmem %s3, %s221
      $region44: #{linear_model_forward.1} parent=39 // pred_fallthru
        _
    $region40: #{linear_model_forward.1} parent=5 // pred_fallthru
      _
  $region6: #{linear_model_forward.1} parent=0 // loop_footer
    %s14 = sadd.s32 1, %s10
  $region7: #{linear_model_forward.1} parent=0 // loop_footer_branch
    %9 = sbr.rel target = $region3
  $region8: #{linear_model_forward.1} parent=0 // loop_exit
    _

</llo_original>
